<compile_context>
chip_gen: v6e
topology: v6e:2x2x1
jax: 0.10.0
libtpu: 0.0.40
codegen_flags: <defaults>
</compile_context>

<pallas_src>
import functools
import math

import jax
import jax.numpy as jnp
from jax.experimental import pallas as pl
from jax.experimental.pallas import tpu as pltpu


# ---------------------------------------------------------------------------
# Helpers
# ---------------------------------------------------------------------------
def _round_up(x, m):
    return ((x + m - 1) // m) * m


def _pick_batch_tile(b):
    # sublane-aligned batch tile; keep <=256 to stay within v7x's smaller VMEM
    return 256 if b >= 256 else _round_up(b, 8)


def _pick_lane_tile(n):
    # lane-dense output tile (multiple of 128)
    return 256 if n >= 256 else 128


# ---------------------------------------------------------------------------
# Kernels
# ---------------------------------------------------------------------------
def _phi_kernel(x_ref, gT_ref, o_ref, *, sconst):
    """phi tile: max(x @ (scale*G_T), scale*constant).  Scale pre-folded into G_T."""
    z = jnp.dot(x_ref[...], gT_ref[...], preferred_element_type=jnp.float32)
    o_ref[...] = jnp.maximum(z, sconst).astype(o_ref.dtype)


def _nnk_relu_fwd_kernel(x_ref, gT_ref, wT_ref, o_ref, acc_ref, *, sconst):
    """Fused forward with R tiled as the reduction (last) grid axis.

    out[i,j] = sum_k  max(x[i] @ G_T[:, k], sconst) @ W_T[k, j]
    (phi is elementwise over R, so applying max per R-chunk before the
     accumulation is exact; padded R columns of G_T / rows of W_T are zero.)
    """
    @pl.when(pl.program_id(2) == 0)
    def _init():
        acc_ref[...] = jnp.zeros_like(acc_ref)

    z = jnp.dot(x_ref[...], gT_ref[...], preferred_element_type=jnp.float32)
    phi = jnp.maximum(z, sconst)
    acc_ref[...] += jnp.dot(phi.astype(wT_ref.dtype), wT_ref[...],
                            preferred_element_type=jnp.float32)

    @pl.when(pl.program_id(2) == pl.num_programs(2) - 1)
    def _done():
        o_ref[...] = acc_ref[...].astype(o_ref.dtype)


# ---------------------------------------------------------------------------
# Wrappers
# ---------------------------------------------------------------------------
def phi_relu_mapping(xw, proj_matrix, constant=0.0):
    """Pallas version of phi_relu_mapping_torch (normalize=False path), 2-D input."""
    B, D = xw.shape
    R, Dg = proj_matrix.shape
    assert D == Dg
    scale = 1.0 / math.sqrt(R)
    sconst = float(scale * constant)

    # Pre-transpose + fold scale in HBM (one-time wrapper cost).
    gT = jnp.transpose(proj_matrix).astype(jnp.float32) * jnp.float32(scale)  # [D, R]

    TM = _pick_batch_tile(B)
    TR = _pick_lane_tile(R)
    Bp = _round_up(B, TM)
    Rp = _round_up(R, TR)

    x_p = jnp.pad(xw.astype(jnp.float32), ((0, Bp - B), (0, 0)))
    g_p = jnp.pad(gT, ((0, 0), (0, Rp - R)))

    out = pl.pallas_call(
        functools.partial(_phi_kernel, sconst=sconst),
        out_shape=jax.ShapeDtypeStruct((Bp, Rp), jnp.float32),
        grid_spec=pltpu.PrefetchScalarGridSpec(
            num_scalar_prefetch=0,
            grid=(Bp // TM, Rp // TR),
            in_specs=[
                pl.BlockSpec((TM, D), lambda i, j: (i, 0)),
                pl.BlockSpec((D, TR), lambda i, j: (0, j)),
            ],
            out_specs=pl.BlockSpec((TM, TR), lambda i, j: (i, j)),
        ),
        compiler_params=pltpu.CompilerParams(
            dimension_semantics=("parallel", "parallel")),
    )(x_p, g_p)
    return out[:B, :R]


def nnk_relu_forward_prepared(x, gT_scaled, wT, *, sconst,
                              compute_dtype=jnp.float32):
    """Fused forward with pre-transposed / pre-scaled operands.

    x: [B, D], gT_scaled: [D, R] (= scale * G.T), wT: [R, N] (= W.T).
    Returns [B, N] in float32.
    """
    B, D = x.shape
    Dg, R = gT_scaled.shape
    Rw, N = wT.shape
    assert D == Dg and R == Rw

    TM = _pick_batch_tile(B)
    TN = _pick_lane_tile(N)
    TK = 512 if R >= 512 else _round_up(R, 128)

    Bp = _round_up(B, TM)
    Np = _round_up(N, TN)
    Rp = _round_up(R, TK)

    # Zero padding keeps semantics exact: padded R columns of G_T and padded
    # R rows / N columns of W_T are zero, so they contribute nothing.
    x_p = jnp.pad(x, ((0, Bp - B), (0, 0))).astype(compute_dtype)
    g_p = jnp.pad(gT_scaled, ((0, 0), (0, Rp - R))).astype(compute_dtype)
    w_p = jnp.pad(wT, ((0, Rp - R), (0, Np - N))).astype(compute_dtype)

    out = pl.pallas_call(
        functools.partial(_nnk_relu_fwd_kernel, sconst=float(sconst)),
        out_shape=jax.ShapeDtypeStruct((Bp, Np), jnp.float32),
        grid_spec=pltpu.PrefetchScalarGridSpec(
            num_scalar_prefetch=0,
            grid=(Bp // TM, Np // TN, Rp // TK),   # reduction (R) axis last
            in_specs=[
                pl.BlockSpec((TM, D), lambda i, j, k: (i, 0)),   # x tile
                pl.BlockSpec((D, TK), lambda i, j, k: (0, k)),   # G_T: const in i, j
                pl.BlockSpec((TK, TN), lambda i, j, k: (k, j)),  # W_T: const in i
            ],
            out_specs=pl.BlockSpec((TM, TN), lambda i, j, k: (i, j)),
            scratch_shapes=[pltpu.VMEM((TM, TN), jnp.float32)],
        ),
        compiler_params=pltpu.CompilerParams(
            dimension_semantics=("parallel", "parallel", "arbitrary")),
    )(x_p, g_p, w_p)
    return out[:B, :N]


def nnk_relu_forward(x, proj_matrix, weights, constant=0.0,
                     compute_dtype=jnp.float32):
    """Convenience wrapper taking the module-layout operands ([R,D], [N,R])."""
    R = proj_matrix.shape[0]
    scale = 1.0 / math.sqrt(R)
    gT_scaled = jnp.transpose(proj_matrix).astype(jnp.float32) * jnp.float32(scale)
    wT = jnp.transpose(weights).astype(jnp.float32)
    return nnk_relu_forward_prepared(x, gT_scaled, wT,
                                     sconst=float(scale * constant),
                                     compute_dtype=compute_dtype)


class NNKReluPallas:
    """Mirror of the PyTorch NNK_Relu module (normalize=False, orthogonal=False)."""

    def __init__(self, input_weights, num_rfs, dim, *, key, constant=0.0,
                 compute_dtype=jnp.float32):
        # TODO(synk): normalize / orthogonal projection options not implemented
        # (the reference module defaults to both off).
        self.num_rfs = num_rfs
        self.dim = dim
        self.constant = float(constant)
        scale = 1.0 / math.sqrt(num_rfs)

        # projection matrix ~ N(0, 1), shape (num_rfs, dim)
        self.projection_matrix = jax.random.normal(key, (num_rfs, dim),
                                                   dtype=jnp.float32)
        # weights = phi(input_weights) -> parameter of shape [N, num_rfs]
        self.weights = phi_relu_mapping(input_weights, self.projection_matrix,
                                        constant=constant)

        # Pre-transpose / pre-scale once in HBM (no in-kernel .T).
        self._gT_scaled = (jnp.transpose(self.projection_matrix)
                           * jnp.float32(scale))            # [D, R]
        self._wT = jnp.transpose(self.weights)               # [R, N]
        self._sconst = float(scale * constant)
        # On v6e/v7x pass compute_dtype=jnp.bfloat16 for ~2-4x MXU throughput
        # (f32 accumulation is kept inside the kernel either way).
        self._fwd = jax.jit(functools.partial(
            nnk_relu_forward_prepared,
            sconst=self._sconst,
            compute_dtype=compute_dtype))

    def __call__(self, x):
        return self._fwd(x, self._gT_scaled, self._wT)


# ---------------------------------------------------------------------------
# Demo / correctness check
# ---------------------------------------------------------------------------
if __name__ == "__main__":
    key = jax.random.PRNGKey(0)
    k_proj, k_w, k_x = jax.random.split(key, 3)

    B, D, R, N = 8, 32, 64, 16   # batch, dim, num_rfs, num input_weights rows
    # Note: D=32 underfills the MXU contraction dim; real workloads should use D>=128.

    input_weights = jax.random.normal(k_w, (N, D), dtype=jnp.float32)
    x = jax.random.normal(k_x, (B, D), dtype=jnp.float32)

    module = NNKReluPallas(input_weights, num_rfs=R, dim=D, key=k_proj,
                           constant=0.0)

    out = jax.block_until_ready(module(x))

    # Pure-JAX reference of the PyTorch forward semantics.
    scale = 1.0 / math.sqrt(R)
    phi_w_ref = scale * jnp.maximum(input_weights @ module.projection_matrix.T, 0.0)
    phi_x_ref = scale * jnp.maximum(x @ module.projection_matrix.T, 0.0)
    ref = phi_x_ref @ phi_w_ref.T

    assert out.shape == (B, N)
    assert jnp.allclose(out, ref, atol=1e-5, rtol=1e-5)

    print("KERNEL_OK")
</pallas_src>

<mosaic_0001>
module attributes {stable_mosaic.version = 11 : i64} {
  func.func @_phi_kernel(%arg0: i32, %arg1: i32, %arg2: memref<16x32xf32, #tpu.memory_space<vmem>>, %arg3: memref<32x128xf32, #tpu.memory_space<vmem>>, %arg4: memref<16x128xf32, #tpu.memory_space<vmem>>) attributes {dimension_semantics = [#tpu.dimension_semantics<parallel>, #tpu.dimension_semantics<parallel>], iteration_bounds = array<i64: 1, 1>, scalar_prefetch = 0 : i64, scratch_operands = 0 : i64, tpu.core_type = #tpu.core_type<tc>, window_params = [{transform_indices = @transform_0, window_bounds = array<i64: 16, 32>}, {transform_indices = @transform_1, window_bounds = array<i64: 32, 128>}, {transform_indices = @transform_2, window_bounds = array<i64: 16, 128>}]} {
    %c0 = arith.constant 0 : index
    %c0_0 = arith.constant 0 : index
    %0 = vector.load %arg2[%c0, %c0_0] : memref<16x32xf32, #tpu.memory_space<vmem>>, vector<16x32xf32>
    %c0_1 = arith.constant 0 : index
    %c0_2 = arith.constant 0 : index
    %1 = vector.load %arg3[%c0_1, %c0_2] : memref<32x128xf32, #tpu.memory_space<vmem>>, vector<32x128xf32>
    %cst = arith.constant dense<0.000000e+00> : vector<16x128xf32>
    %2 = tpu.matmul %0, %1, %cst {dimension_numbers = #tpu.dot_dimension_numbers<[1], [0], [0], [1], [0, 0, 1, 1], [], []>} : vector<16x32xf32>, vector<32x128xf32>, vector<16x128xf32> -> vector<16x128xf32>
    %cst_3 = arith.constant 0.000000e+00 : f32
    %3 = vector.broadcast %cst_3 : f32 to vector<16x128xf32>
    %4 = arith.maximumf %2, %3 : vector<16x128xf32>
    %c0_4 = arith.constant 0 : index
    %c0_5 = arith.constant 0 : index
    %5 = vector.load %arg4[%c0_4, %c0_5] : memref<16x128xf32, #tpu.memory_space<vmem>>, vector<16x128xf32>
    tpu.vector_store %arg4[%c0_4, %c0_5], %4 {strides = array<i32>} : memref<16x128xf32, #tpu.memory_space<vmem>>, vector<16x128xf32>,
    return
  }
  func.func @transform_0(%arg0: i32, %arg1: i32) -> (i32, i32) {
    %c0_i32 = arith.constant 0 : i32
    %c0_i32_0 = arith.constant 0 : i32
    return %arg0, %c0_i32 : i32, i32
  }
  func.func @transform_1(%arg0: i32, %arg1: i32) -> (i32, i32) {
    %c0_i32 = arith.constant 0 : i32
    %c0_i32_0 = arith.constant 0 : i32
    return %c0_i32, %arg1 : i32, i32
  }
  func.func @transform_2(%arg0: i32, %arg1: i32) -> (i32, i32) {
    %c0_i32 = arith.constant 0 : i32
    return %arg0, %arg1 : i32, i32
  }
}

</mosaic_0001>

<llo_original>
// kernel: tpu_custom_call.1
$region0: #{tpu_custom_call.1}
  #allocation0 [shape = 'u32[]', space=smem, size = 0x4, offset = 0x4, fixed_abs, tag = 'smem constant byte address 0x4 - core index']
  #allocation1 [shape = 'u32[144,128]{1,0:T(1,128)}', space=vmem, size = 0x12000, scoped, tag = 'internal scratch']
  %s0 = inlined_call_operand.hbm [shape: f32[16,32], index: 0, kind: input, shape index: {}]
  %s1 = inlined_call_operand.hbm [shape: f32[32,128], index: 1, kind: input, shape index: {}]
  %s2 = inlined_call_operand.hbm [shape: f32[16,128], index: 2, kind: output, shape index: {}]
  %s3 = sld [smem:[#allocation0]]
  $region26: #{tpu_custom_call.1} parent=0
    _
  %s5 = ssub.s32 1, %s3
  %s6 = scalar_select 0, %s5, %s3
  $region1: #{tpu_custom_call.1} parent=0
    #allocation2 [shape = 'u8[8192]{0}', space=vmem, size = 0x2000, scoped, tag = 'input window, operand 0, single buffered']
    #allocation3 [shape = 's32[1]{0}', space=sflag, size = 0x4, scoped, tag = 'scoped memory for tpu_custom_call.1']
    #allocation4 [shape = 's32[1]{0}', space=sflag, size = 0x4, scoped, tag = 'scoped memory for tpu_custom_call.1']
    #allocation5 [shape = 'u8[16384]{0}', space=vmem, size = 0x4000, scoped, tag = 'input window, operand 1, single buffered']
    #allocation6 [shape = 's32[1]{0}', space=sflag, size = 0x4, scoped, tag = 'scoped memory for tpu_custom_call.1']
    #allocation7 [shape = 'u8[8192]{0}', space=vmem, size = 0x2000, scoped, tag = 'output window, operand 0, single buffered']
    %7 = vsyncpa [#allocation3], 0
    %8 = vsyncpa [#allocation6], 0
    %9 = vsyncpa [#allocation4], 0
    // Predicated region
    $region2: #{tpu_custom_call.1} parent=1 // pred_check
      _
    $region3: #{tpu_custom_call.1} parent=1 // pred_check_branch
      %11 = sbr.rel (0) target = $region5
    $region4: #{tpu_custom_call.1} parent=1 // pred_region
      %s13 = ssub.s32 256, 256
      %14 = vsyncadd [#allocation3], %s13
      %s15 = sshll.u32 [#allocation2], 4
      %s16 = int_to_ptr.vmem [resolvable:$true] %s15
      %21 = dma.hbm_to_vmem [thread:$0]  %s0, 256, %s16, [#allocation3], 128, 128, 8
    $region5: #{tpu_custom_call.1} parent=1 // pred_fallthru
      _
    // Predicated region
    $region6: #{tpu_custom_call.1} parent=1 // pred_check
      _
    $region7: #{tpu_custom_call.1} parent=1 // pred_check_branch
      %23 = sbr.rel (0) target = $region9
    $region8: #{tpu_custom_call.1} parent=1 // pred_region
      %s25 = ssub.s32 512, 512
      %26 = vsyncadd [#allocation6], %s25
      %s27 = sshll.u32 [#allocation5], 4
      %s28 = int_to_ptr.vmem [resolvable:$true] %s27
      %33 = dma.hbm_to_vmem [thread:$0]  %s1, 512, %s28, [#allocation6], 128, 128, 8
    $region9: #{tpu_custom_call.1} parent=1 // pred_fallthru
      _
    // Predicated region
    $region10: #{tpu_custom_call.1} parent=1 // pred_check
      _
    $region11: #{tpu_custom_call.1} parent=1 // pred_check_branch
      %35 = sbr.rel (0) target = $region13
    $region12: #{tpu_custom_call.1} parent=1 // pred_region
      %36 = dma.done [#allocation3], 256
    $region13: #{tpu_custom_call.1} parent=1 // pred_fallthru
      _
    // Predicated region
    $region14: #{tpu_custom_call.1} parent=1 // pred_check
      _
    $region15: #{tpu_custom_call.1} parent=1 // pred_check_branch
      %38 = sbr.rel (0) target = $region17
    $region16: #{tpu_custom_call.1} parent=1 // pred_region
      %39 = dma.done [#allocation6], 512
    $region17: #{tpu_custom_call.1} parent=1 // pred_fallthru
      _
    %v40 = vld [vmem:[#allocation2] sm:$0xff]
    %v41 = vld [vmem:[#allocation2 + $0x8] sm:$0xff]
    %v42 = vld [vmem:[#allocation5] sm:$0xff]
    %v43 = vld [vmem:[#allocation5 + $0x8] sm:$0xff]
    %v44 = vld [vmem:[#allocation5 + $0x10] sm:$0xff]
    %v45 = vld [vmem:[#allocation5 + $0x18] sm:$0xff]
    %vm46 = vcmask 261120
    %v48 = vsel %vm46, %v40, 0
    %v51 = vsel %vm46, %v41, 0
    %53 = vmatprep.subr.mxu0 0.0
    %54 = vmatpush1.msra.mxu0 0.0
    %55 = vmatprep.subr.mxu0 0.0
    %56 = vmatpush1.msra.mxu0 0.0
    %57 = vmatprep.subr.mxu0 0.0
    %58 = vmatpush1.msra.mxu0 0.0
    %59 = vmatprep.subr.mxu0 0.0
    %60 = vmatpush1.msra.mxu0 0.0
    %61 = vmatprep.subr.mxu0 0.0
    %62 = vmatpush1.msra.mxu0 0.0
    %63 = vmatprep.subr.mxu0 0.0
    %64 = vmatpush1.msra.mxu0 0.0
    %65 = vmatprep.subr.mxu0 0.0
    %66 = vmatpush1.msra.mxu0 0.0
    %67 = vmatprep.subr.mxu0 0.0
    %68 = vmatpush1.msra.mxu0 0.0
    %69 = vmatprep.subr.mxu0 0.0
    %70 = vmatpush1.msra.mxu0 0.0
    %71 = vmatprep.subr.mxu0 0.0
    %72 = vmatpush1.msra.mxu0 0.0
    %73 = vmatprep.subr.mxu0 0.0
    %74 = vmatpush1.msra.mxu0 0.0
    %75 = vmatprep.subr.mxu0 0.0
    %76 = vmatpush1.msra.mxu0 0.0
    %77 = vmatprep.subr.mxu0 0.0
    %78 = vmatpush1.msra.mxu0 %v45
    %79 = vmatprep.subr.mxu0 0.0
    %80 = vmatpush1.msra.mxu0 %v44
    %81 = vmatprep.subr.mxu0 0.0
    %82 = vmatpush1.msra.mxu0 %v43
    %83 = vmatprep.subr.mxu0 0.0
    %84 = vmatpush1.msra.mxu0 %v42
    %85 = vmatprep.subr.mxu0 0.0
    %86 = vmatpush2.msra.mxu0 0.0
    %87 = vmatprep.subr.mxu0 0.0
    %88 = vmatpush2.msra.mxu0 0.0
    %89 = vmatprep.subr.mxu0 0.0
    %90 = vmatpush2.msra.mxu0 0.0
    %91 = vmatprep.subr.mxu0 0.0
    %92 = vmatpush2.msra.mxu0 0.0
    %93 = vmatprep.subr.mxu0 0.0
    %94 = vmatpush2.msra.mxu0 0.0
    %95 = vmatprep.subr.mxu0 0.0
    %96 = vmatpush2.msra.mxu0 0.0
    %97 = vmatprep.subr.mxu0 0.0
    %98 = vmatpush2.msra.mxu0 0.0
    %99 = vmatprep.subr.mxu0 0.0
    %100 = vmatpush2.msra.mxu0 0.0
    %101 = vmatprep.subr.mxu0 0.0
    %102 = vmatpush2.msra.mxu0 0.0
    %103 = vmatprep.subr.mxu0 0.0
    %104 = vmatpush2.msra.mxu0 0.0
    %105 = vmatprep.subr.mxu0 0.0
    %106 = vmatpush2.msra.mxu0 0.0
    %107 = vmatprep.subr.mxu0 0.0
    %108 = vmatpush2.msra.mxu0 0.0
    %109 = vmatprep.subr.mxu0 0.0
    %110 = vmatpush2.msra.mxu0 0.0
    %111 = vmatprep.subr.mxu0 0.0
    %112 = vmatpush2.msra.mxu0 0.0
    %113 = vmatprep.subr.mxu0 0.0
    %114 = vmatpush2.msra.mxu0 0.0
    %115 = vmatprep.subr.mxu0 0.0
    %116 = vmatpush2.msra.mxu0 0.0
    %117 = vmatprep.mubr.f32.mxu0 0.0
    %118 = vmatmul.mubr.f32.gmra.mxu0 %v48
    %v119 = vpop.f32.mrf.mxu0
    %v120 = vadd.f32 0.0, %v119
    %v121 = vpop.f32.mrf.mxu0
    %122 = vmatprep.mubr.f32.mxu0 0.0
    %123 = vmatmul.mubr.f32.gmra.mxu0 %v51
    %v124 = vpop.f32.mrf.mxu0
    %v125 = vadd.f32 0.0, %v124
    %v126 = vpop.f32.mrf.mxu0
    %127 = vdwg.mxu0
    %v128 = vmax.f32 %v120, 0.0
    %v129 = vmax.f32 %v125, 0.0
    %130 = vst [vmem:[#allocation7] sm:$0xff] %v128
    %131 = vst [vmem:[#allocation7 + $0x8] sm:$0xff] %v129
    // Predicated region
    $region18: #{tpu_custom_call.1} parent=1 // pred_check
      _
    $region19: #{tpu_custom_call.1} parent=1 // pred_check_branch
      %133 = sbr.rel (0) target = $region21
    $region20: #{tpu_custom_call.1} parent=1 // pred_region
      %s135 = ssub.s32 256, 256
      %136 = vsyncadd [#allocation4], %s135
      %s137 = sshll.u32 [#allocation7], 4
      %s138 = int_to_ptr.vmem [resolvable:$true] %s137
      %143 = dma.vmem_to_hbm [thread:$0]  %s138, 256, %s2, [#allocation4], 128, 128, 8
    $region21: #{tpu_custom_call.1} parent=1 // pred_fallthru
      _
    // Predicated region
    $region22: #{tpu_custom_call.1} parent=1 // pred_check
      _
    $region23: #{tpu_custom_call.1} parent=1 // pred_check_branch
      %145 = sbr.rel (0) target = $region25
    $region24: #{tpu_custom_call.1} parent=1 // pred_region
      %146 = dma.done [#allocation4], 256
    $region25: #{tpu_custom_call.1} parent=1 // pred_fallthru
      _
    %147 = vsyncpa [#allocation3], 1
    %148 = vsyncpa [#allocation6], 1
    %149 = vsyncpa [#allocation4], 1

</llo_original>
